<compile_context>
chip_gen: v5e
topology: v5e:2x2
jax: 0.10.0
libtpu: 0.0.40
codegen_flags: <defaults>
</compile_context>

<pallas_src>
import functools
import math

import jax
import jax.numpy as jnp
from jax.experimental import pallas as pl
from jax.experimental.pallas import tpu as pltpu


def _cdiv(a: int, b: int) -> int:
    return -(-a // b)


def _device_budgets():
    """(per-step input bytes, vmem_limit_bytes) sized to this TPU generation."""
    try:
        vmem_cap = int(pltpu.get_tpu_info().vmem_capacity_bytes)
    except Exception:
        vmem_cap = 64 * 1024 * 1024
    if vmem_cap >= 96 * 1024 * 1024:          # v5e / v6e: 128 MiB VMEM
        return 9 * 1024 * 1024, 64 * 1024 * 1024
    # v7x: 64 MiB VMEM per TensorCore -> leave headroom for temporaries.
    return 6 * 1024 * 1024, 48 * 1024 * 1024


def _weighted_loss_kernel(x_ref, y_ref, w_ref, num_ref, den_ref, *,
                          tr, tc, r_valid, k_tiles, needs_mask, tr_mult8):
    p = pl.program_id(0)   # row-chunk split (parallel; feeds both v7x cores)
    k = pl.program_id(2)   # packed-row reduction axis (innermost, "arbitrary")

    @pl.when(k == 0)
    def _():
        num_ref[...] = jnp.zeros_like(num_ref)
        den_ref[...] = jnp.zeros_like(den_ref)

    x = x_ref[...].astype(jnp.float32)
    y = y_ref[...].astype(jnp.float32)
    w = w_ref[...].astype(jnp.float32)

    # BCEWithLogitsLoss, reduction='none' (numerically stable form):
    #   max(x, 0) - x*y + log1p(exp(-|x|))
    loss = jnp.maximum(x, 0.0) - x * y + jnp.log1p(jnp.exp(-jnp.abs(x)))
    lw = loss * w

    if needs_mask:
        # Mask packed rows past the real extent (replaces wrapper-side padding;
        # also neutralizes clamped duplicate tiles from an odd chunk split).
        tile = p * k_tiles + k                                 # logical tile id
        row = jax.lax.broadcasted_iota(jnp.int32, (tr, tc), 0) + tile * tr
        valid = row < r_valid
        lw = jnp.where(valid, lw, 0.0)
        w = jnp.where(valid, w, 0.0)

    if tr_mult8:
        # Free reshape (each group of 8 rows is one vreg tile): the axis-0 sum
        # is pure VALU vreg adds; no per-step cross-sublane reduction.
        num_ref[...] += lw.reshape(tr // 8, 8, tc).sum(axis=0)[None]
        den_ref[...] += w.reshape(tr // 8, 8, tc).sum(axis=0)[None]
    else:
        # Tiny single-tile case (tr == R < 8*k); fold into sublane row 0 only.
        num_ref[:, 0:1, :] += lw.sum(axis=0, keepdims=True)[None]
        den_ref[:, 0:1, :] += w.sum(axis=0, keepdims=True)[None]


def weighted_loss(logits, ground_truth, weights):
    assert logits.shape == ground_truth.shape == weights.shape
    N, T = logits.shape

    # Pack g batch rows per kernel row so the lane (last) dim is a 128-multiple.
    g = 128 // math.gcd(T, 128)
    C = g * T

    rem = N % g
    if rem:
        # TODO(synk): minimal fallback pad (< g zero rows -> zero weights ->
        # zero num/den contribution) when the batch is not a multiple of g.
        # The common multiple-of-g batch path below is completely copy-free.
        pad = g - rem
        logits = jnp.pad(logits, ((0, pad), (0, 0)))
        ground_truth = jnp.pad(ground_truth, ((0, pad), (0, 0)))
        weights = jnp.pad(weights, ((0, pad), (0, 0)))
    R = logits.shape[0] // g

    # Row-major reshape is free (no data movement): [R*g, T] -> [R, g*T].
    xp = logits.reshape(R, C)
    yp = ground_truth.reshape(R, C)
    wp = weights.reshape(R, C)

    # Column (task) tiling: largest multiple-of-128 divisor of C, capped.
    tc = max(d for d in range(128, min(C, 2048) + 1, 128) if C % d == 0)

    # Row (reduction) tiling: budget the grid step in bytes, not rows.
    step_bytes, vmem_limit = _device_budgets()
    sum_itemsize = xp.dtype.itemsize + yp.dtype.itemsize + wp.dtype.itemsize
    tr_budget = max(32, (step_bytes // (tc * sum_itemsize)) // 32 * 32)
    if R <= tr_budget:
        tr, n_row_tiles = R, 1          # single full-extent row tile (legal block)
    else:
        tr = tr_budget                  # multiple of 32 (f32/bf16/int8 sublane tiles)
        n_row_tiles = _cdiv(R, tr)

    # Split the row reduction into P independent chunks so v7x's two
    # TensorCores both work even when there is a single column tile.
    P = 2 if n_row_tiles >= 2 else 1
    k_tiles = _cdiv(n_row_tiles, P)
    needs_mask = (P * k_tiles * tr) != R
    tr_mult8 = (tr % 8 == 0)

    def in_map(p, i, k):
        # Clamp so an odd last chunk never indexes past the array; the
        # in-kernel mask zeroes any such duplicated tile's contribution.
        return (jnp.minimum(p * k_tiles + k, n_row_tiles - 1), i)

    def out_map(p, i, k):
        return (p, 0, i)

    kernel = functools.partial(
        _weighted_loss_kernel, tr=tr, tc=tc, r_valid=R, k_tiles=k_tiles,
        needs_mask=needs_mask, tr_mult8=tr_mult8)

    num_out, den_out = pl.pallas_call(
        kernel,
        out_shape=(jax.ShapeDtypeStruct((P, 8, C), jnp.float32),
                   jax.ShapeDtypeStruct((P, 8, C), jnp.float32)),
        grid_spec=pltpu.PrefetchScalarGridSpec(
            num_scalar_prefetch=0,
            grid=(P, C // tc, k_tiles),
            in_specs=[
                pl.BlockSpec((tr, tc), in_map),
                pl.BlockSpec((tr, tc), in_map),
                pl.BlockSpec((tr, tc), in_map),
            ],
            out_specs=(
                pl.BlockSpec((1, 8, tc), out_map),
                pl.BlockSpec((1, 8, tc), out_map),
            ),
        ),
        compiler_params=pltpu.CompilerParams(
            dimension_semantics=("parallel", "parallel", "arbitrary"),
            vmem_limit_bytes=vmem_limit,
        ),
    )(xp, yp, wp)

    # Tiny XLA epilogue: fold the P row-chunks, the 8 sublane rows and the g
    # packed groups, apply the +1e-8 guard after the full sum (as in PyTorch),
    # then mean over the TRUE number of tasks.
    num_t = num_out.sum(axis=(0, 1)).reshape(g, T).sum(axis=0)
    den_t = den_out.sum(axis=(0, 1)).reshape(g, T).sum(axis=0)
    per_task = num_t / (den_t + 1e-8)
    return jnp.mean(per_task)


def weighted_loss_ref(logits, ground_truth, weights):
    """Pure-JAX reference mirroring the PyTorch module."""
    x = logits.astype(jnp.float32)
    y = ground_truth.astype(jnp.float32)
    w = weights.astype(jnp.float32)
    loss = jnp.maximum(x, 0.0) - x * y + jnp.log1p(jnp.exp(-jnp.abs(x)))
    loss = loss * w
    loss = jnp.sum(loss, axis=0) / (jnp.sum(w, axis=0) + 1e-8)
    return jnp.mean(loss)


if __name__ == "__main__":
    key = jax.random.PRNGKey(0)
    k1, k2, k3 = jax.random.split(key, 3)

    N, T = 8, 16  # batch=8, tasks=16
    logits = jax.random.normal(k1, (N, T), dtype=jnp.float32)
    ground_truth = jax.random.bernoulli(k2, 0.5, (N, T)).astype(jnp.float32)
    # multi-task mask-style weights (0/1), as used in kmol for missing labels
    weights = jax.random.bernoulli(k3, 0.7, (N, T)).astype(jnp.float32)

    loss_fn = jax.jit(weighted_loss)

    # f32 path: exact match against the reference.
    out = jax.block_until_ready(loss_fn(logits, ground_truth, weights))
    ref = jax.block_until_ready(weighted_loss_ref(logits, ground_truth, weights))
    assert jnp.allclose(out, ref, rtol=1e-5, atol=1e-5), (out, ref)

    # bf16 inputs (halves HBM traffic at scale); accumulation stays f32 in-kernel.
    lb = logits.astype(jnp.bfloat16)
    gb = ground_truth.astype(jnp.bfloat16)
    wb = weights.astype(jnp.bfloat16)
    out_bf16 = jax.block_until_ready(loss_fn(lb, gb, wb))
    ref_bf16 = weighted_loss_ref(lb.astype(jnp.float32), gb.astype(jnp.float32),
                                 wb.astype(jnp.float32))
    assert jnp.allclose(out_bf16, ref_bf16, rtol=1e-3, atol=1e-3), (out_bf16, ref_bf16)

    print("KERNEL_OK")
</pallas_src>

<mosaic_0001>
module attributes {stable_mosaic.version = 11 : i64} {
  func.func @_weighted_loss_kernel(%arg0: i32, %arg1: i32, %arg2: i32, %arg3: memref<1x128xf32, #tpu.memory_space<vmem>>, %arg4: memref<1x128xf32, #tpu.memory_space<vmem>>, %arg5: memref<1x128xf32, #tpu.memory_space<vmem>>, %arg6: memref<1x8x128xf32, #tpu.memory_space<vmem>>, %arg7: memref<1x8x128xf32, #tpu.memory_space<vmem>>) attributes {dimension_semantics = [#tpu.dimension_semantics<parallel>, #tpu.dimension_semantics<parallel>, #tpu.dimension_semantics<arbitrary>], iteration_bounds = array<i64: 1, 1, 1>, scalar_prefetch = 0 : i64, scratch_operands = 0 : i64, tpu.core_type = #tpu.core_type<tc>, window_params = [{transform_indices = @transform_0, window_bounds = array<i64: 1, 128>}, {transform_indices = @transform_1, window_bounds = array<i64: 1, 128>}, {transform_indices = @transform_2, window_bounds = array<i64: 1, 128>}, {transform_indices = @transform_3, window_bounds = array<i64: 1, 8, 128>}, {transform_indices = @transform_4, window_bounds = array<i64: 1, 8, 128>}]} {
    %c0_i32 = arith.constant 0 : i32
    %0 = arith.cmpi eq, %arg2, %c0_i32 : i32
    %1 = arith.extui %0 : i1 to i32
    %c0_i32_0 = arith.constant 0 : i32
    %2 = arith.cmpi ne, %1, %c0_i32_0 : i32
    scf.if %2 {
      %cst_21 = arith.constant 0.000000e+00 : f32
      %29 = vector.broadcast %cst_21 : f32 to vector<1x8x128xf32>
      %c0_22 = arith.constant 0 : index
      %c0_23 = arith.constant 0 : index
      %c0_24 = arith.constant 0 : index
      %30 = vector.load %arg6[%c0_22, %c0_23, %c0_24] : memref<1x8x128xf32, #tpu.memory_space<vmem>>, vector<1x8x128xf32>
      tpu.vector_store %arg6[%c0_22, %c0_23, %c0_24], %29 {strides = array<i32>} : memref<1x8x128xf32, #tpu.memory_space<vmem>>, vector<1x8x128xf32>,
      %cst_25 = arith.constant 0.000000e+00 : f32
      %31 = vector.broadcast %cst_25 : f32 to vector<1x8x128xf32>
      %c0_26 = arith.constant 0 : index
      %c0_27 = arith.constant 0 : index
      %c0_28 = arith.constant 0 : index
      %32 = vector.load %arg7[%c0_26, %c0_27, %c0_28] : memref<1x8x128xf32, #tpu.memory_space<vmem>>, vector<1x8x128xf32>
      tpu.vector_store %arg7[%c0_26, %c0_27, %c0_28], %31 {strides = array<i32>} : memref<1x8x128xf32, #tpu.memory_space<vmem>>, vector<1x8x128xf32>,
    } else {
    }
    %c0 = arith.constant 0 : index
    %c0_1 = arith.constant 0 : index
    %3 = vector.load %arg3[%c0, %c0_1] : memref<1x128xf32, #tpu.memory_space<vmem>>, vector<1x128xf32>
    %c0_2 = arith.constant 0 : index
    %c0_3 = arith.constant 0 : index
    %4 = vector.load %arg4[%c0_2, %c0_3] : memref<1x128xf32, #tpu.memory_space<vmem>>, vector<1x128xf32>
    %c0_4 = arith.constant 0 : index
    %c0_5 = arith.constant 0 : index
    %5 = vector.load %arg5[%c0_4, %c0_5] : memref<1x128xf32, #tpu.memory_space<vmem>>, vector<1x128xf32>
    %cst = arith.constant 0.000000e+00 : f32
    %6 = vector.broadcast %cst : f32 to vector<1x128xf32>
    %7 = arith.maximumf %3, %6 : vector<1x128xf32>
    %8 = arith.mulf %3, %4 : vector<1x128xf32>
    %9 = arith.subf %7, %8 : vector<1x128xf32>
    %10 = math.absf %3 : vector<1x128xf32>
    %cst_6 = arith.constant 0.000000e+00 : f32
    %11 = vector.broadcast %cst_6 : f32 to vector<1x128xf32>
    %12 = arith.subf %11, %10 : vector<1x128xf32>
    %13 = math.exp %12 : vector<1x128xf32>
    %14 = math.log1p %13 : vector<1x128xf32>
    %15 = arith.addf %9, %14 : vector<1x128xf32>
    %16 = arith.mulf %15, %5 : vector<1x128xf32>
    %c0_7 = arith.constant 0 : index
    %c0_8 = arith.constant 0 : index
    %c0_9 = arith.constant 0 : index
    %17 = vector.load %arg6[%c0_7, %c0_8, %c0_9] : memref<1x8x128xf32, #tpu.memory_space<vmem>>, vector<1x1x128xf32>
    %cst_10 = arith.constant dense<0.000000e+00> : vector<128xf32>
    %18 = vector.multi_reduction <add>, %16, %cst_10 [0] : vector<1x128xf32> to vector<128xf32>
    %19 = vector.shape_cast %18 : vector<128xf32> to vector<1x128xf32>
    %20 = vector.shape_cast %19 : vector<1x128xf32> to vector<1x1x128xf32>
    %21 = arith.addf %17, %20 : vector<1x1x128xf32>
    %c0_11 = arith.constant 0 : index
    %c0_12 = arith.constant 0 : index
    %c0_13 = arith.constant 0 : index
    %22 = vector.load %arg6[%c0_11, %c0_12, %c0_13] : memref<1x8x128xf32, #tpu.memory_space<vmem>>, vector<1x1x128xf32>
    tpu.vector_store %arg6[%c0_11, %c0_12, %c0_13], %21 {strides = array<i32>} : memref<1x8x128xf32, #tpu.memory_space<vmem>>, vector<1x1x128xf32>,
    %c0_14 = arith.constant 0 : index
    %c0_15 = arith.constant 0 : index
    %c0_16 = arith.constant 0 : index
    %23 = vector.load %arg7[%c0_14, %c0_15, %c0_16] : memref<1x8x128xf32, #tpu.memory_space<vmem>>, vector<1x1x128xf32>
    %cst_17 = arith.constant dense<0.000000e+00> : vector<128xf32>
    %24 = vector.multi_reduction <add>, %5, %cst_17 [0] : vector<1x128xf32> to vector<128xf32>
    %25 = vector.shape_cast %24 : vector<128xf32> to vector<1x128xf32>
    %26 = vector.shape_cast %25 : vector<1x128xf32> to vector<1x1x128xf32>
    %27 = arith.addf %23, %26 : vector<1x1x128xf32>
    %c0_18 = arith.constant 0 : index
    %c0_19 = arith.constant 0 : index
    %c0_20 = arith.constant 0 : index
    %28 = vector.load %arg7[%c0_18, %c0_19, %c0_20] : memref<1x8x128xf32, #tpu.memory_space<vmem>>, vector<1x1x128xf32>
    tpu.vector_store %arg7[%c0_18, %c0_19, %c0_20], %27 {strides = array<i32>} : memref<1x8x128xf32, #tpu.memory_space<vmem>>, vector<1x1x128xf32>,
    return
  }
  func.func @transform_0(%arg0: i32, %arg1: i32, %arg2: i32) -> (i32, i32) {
    %c1_i32 = arith.constant 1 : i32
    %0 = arith.muli %arg0, %c1_i32 : i32
    %1 = arith.addi %0, %arg2 : i32
    %c0_i32 = arith.constant 0 : i32
    %2 = arith.minsi %1, %c0_i32 : i32
    %c0_i32_0 = arith.constant 0 : i32
    return %2, %arg1 : i32, i32
  }
  func.func @transform_1(%arg0: i32, %arg1: i32, %arg2: i32) -> (i32, i32) {
    %c1_i32 = arith.constant 1 : i32
    %0 = arith.muli %arg0, %c1_i32 : i32
    %1 = arith.addi %0, %arg2 : i32
    %c0_i32 = arith.constant 0 : i32
    %2 = arith.minsi %1, %c0_i32 : i32
    %c0_i32_0 = arith.constant 0 : i32
    return %2, %arg1 : i32, i32
  }
  func.func @transform_2(%arg0: i32, %arg1: i32, %arg2: i32) -> (i32, i32) {
    %c1_i32 = arith.constant 1 : i32
    %0 = arith.muli %arg0, %c1_i32 : i32
    %1 = arith.addi %0, %arg2 : i32
    %c0_i32 = arith.constant 0 : i32
    %2 = arith.minsi %1, %c0_i32 : i32
    %c0_i32_0 = arith.constant 0 : i32
    return %2, %arg1 : i32, i32
  }
  func.func @transform_3(%arg0: i32, %arg1: i32, %arg2: i32) -> (i32, i32, i32) {
    %c0_i32 = arith.constant 0 : i32
    %c0_i32_0 = arith.constant 0 : i32
    return %arg0, %c0_i32, %arg1 : i32, i32, i32
  }
  func.func @transform_4(%arg0: i32, %arg1: i32, %arg2: i32) -> (i32, i32, i32) {
    %c0_i32 = arith.constant 0 : i32
    %c0_i32_0 = arith.constant 0 : i32
    return %arg0, %c0_i32, %arg1 : i32, i32, i32
  }
}

</mosaic_0001>

<llo_original>
// kernel: weighted_loss.1
$region0: #{weighted_loss.1}
  #allocation0 [shape = 'u32[]', space=smem, size = 0x4, offset = 0x4, fixed_abs, tag = 'smem constant byte address 0x4 - core index']
  #allocation1 [shape = 'u32[72,128]{1,0:T(1,128)}', space=vmem, size = 0x9000, scoped, tag = 'internal scratch']
  %s0 = inlined_call_operand.vmem [shape: f32[1,128], index: 0, kind: input, shape index: {}]
  %s1 = inlined_call_operand.vmem [shape: f32[1,128], index: 1, kind: input, shape index: {}]
  %s2 = inlined_call_operand.vmem [shape: f32[1,128], index: 2, kind: input, shape index: {}]
  %s3 = inlined_call_operand.vmem [shape: f32[1,8,128], index: 3, kind: output, shape index: {0}]
  %s4 = inlined_call_operand.vmem [shape: f32[1,8,128], index: 4, kind: output, shape index: {1}]
  %5 = xla_tuple %s3, %s4
  %s6 = sld [smem:[#allocation0]]
  $region34: #{weighted_loss.1} parent=0
    _
  %s8 = ssub.s32 1, %s6
  %s9 = scalar_select 0, %s8, %s6
  // Predicated region
  $region2: #{weighted_loss.1} parent=0 // pred_check
    _
  $region3: #{weighted_loss.1} parent=0 // pred_check_branch
    %11 = sbr.rel (0) target = $region5
  $region4: #{weighted_loss.1} parent=0 // pred_region
    %s12 = sadd.s32 0, 0
    %p13 = scmp.lt.s32.totalorder %s12, 0
    %s14 = scalar_select %p13, %s12, 0
    %p15 = scmp.lt.s32.totalorder %s14, 0
    %s16 = scalar_select %p15, %s14, 0
    %s17 = scalar_lea.vmem %s0, %s16
    %s18 = sadd.s32 0, 0
    %p19 = scmp.lt.s32.totalorder %s18, 0
    %s20 = scalar_select %p19, %s18, 0
  $region5: #{weighted_loss.1} parent=0 // pred_fallthru
    _
  // Predicated region
  $region6: #{weighted_loss.1} parent=0 // pred_check
    _
  $region7: #{weighted_loss.1} parent=0 // pred_check_branch
    %22 = sbr.rel (0) target = $region9
  $region8: #{weighted_loss.1} parent=0 // pred_region
    %s23 = sadd.s32 0, 0
    %p24 = scmp.lt.s32.totalorder %s23, 0
    %s25 = scalar_select %p24, %s23, 0
    %p26 = scmp.lt.s32.totalorder %s25, 0
    %s27 = scalar_select %p26, %s25, 0
    %s28 = scalar_lea.vmem %s1, %s27
    %s29 = sadd.s32 0, 0
    %p30 = scmp.lt.s32.totalorder %s29, 0
    %s31 = scalar_select %p30, %s29, 0
  $region9: #{weighted_loss.1} parent=0 // pred_fallthru
    _
  // Predicated region
  $region10: #{weighted_loss.1} parent=0 // pred_check
    _
  $region11: #{weighted_loss.1} parent=0 // pred_check_branch
    %33 = sbr.rel (0) target = $region13
  $region12: #{weighted_loss.1} parent=0 // pred_region
    %s34 = sadd.s32 0, 0
    %p35 = scmp.lt.s32.totalorder %s34, 0
    %s36 = scalar_select %p35, %s34, 0
    %p37 = scmp.lt.s32.totalorder %s36, 0
    %s38 = scalar_select %p37, %s36, 0
    %s39 = scalar_lea.vmem %s2, %s38
    %s40 = sadd.s32 0, 0
    %p41 = scmp.lt.s32.totalorder %s40, 0
    %s42 = scalar_select %p41, %s40, 0
  $region13: #{weighted_loss.1} parent=0 // pred_fallthru
    _
  %s43 = sadd.s32 0, 0
  %p44 = scmp.lt.s32.totalorder %s43, 0
  %s45 = scalar_select %p44, %s43, 0
  %p46 = scmp.lt.s32.totalorder %s45, 0
  %s47 = scalar_select %p46, %s45, 0
  %s48 = scalar_lea.vmem %s0, %s47
  %s49 = sadd.s32 0, 0
  %p50 = scmp.lt.s32.totalorder %s49, 0
  %s51 = scalar_select %p50, %s49, 0
  %p52 = scmp.lt.s32.totalorder %s51, 0
  %s53 = scalar_select %p52, %s51, 0
  %s54 = scalar_lea.vmem %s1, %s53
  %s55 = sadd.s32 0, 0
  %p56 = scmp.lt.s32.totalorder %s55, 0
  %s57 = scalar_select %p56, %s55, 0
  %p58 = scmp.lt.s32.totalorder %s57, 0
  %s59 = scalar_select %p58, %s57, 0
  %s60 = scalar_lea.vmem %s2, %s59
  %s61 = sadd.s32 0, 0
  %p62 = scmp.lt.s32.totalorder %s61, 0
  %s63 = scalar_select %p62, %s61, 0
  %p64 = scmp.lt.s32.totalorder %s63, 0
  %s65 = scalar_select %p64, %s63, 0
  %s66 = scalar_lea.vmem %s0, %s65
  %s67 = sadd.s32 0, 0
  %p68 = scmp.lt.s32.totalorder %s67, 0
  %s69 = scalar_select %p68, %s67, 0
  %s70 = sadd.s32 0, 0
  %p71 = scmp.lt.s32.totalorder %s70, 0
  %s72 = scalar_select %p71, %s70, 0
  %p73 = scmp.lt.s32.totalorder %s72, 0
  %s74 = scalar_select %p73, %s72, 0
  %s75 = scalar_lea.vmem %s1, %s74
  %s76 = sadd.s32 0, 0
  %p77 = scmp.lt.s32.totalorder %s76, 0
  %s78 = scalar_select %p77, %s76, 0
  %s79 = sadd.s32 0, 0
  %p80 = scmp.lt.s32.totalorder %s79, 0
  %s81 = scalar_select %p80, %s79, 0
  %p82 = scmp.lt.s32.totalorder %s81, 0
  %s83 = scalar_select %p82, %s81, 0
  %s84 = scalar_lea.vmem %s2, %s83
  %s85 = sadd.s32 0, 0
  %p86 = scmp.lt.s32.totalorder %s85, 0
  %s87 = scalar_select %p86, %s85, 0
  %p88 = scmp.eq.s32.totalorder 0, 0
  // Predicated region
  $region14: #{weighted_loss.1} parent=0 // pred_check
    %p89 = pneg %p88
  $region15: #{weighted_loss.1} parent=0 // pred_check_branch
    %91 = sbr.rel (%p89) target = $region17
  $region16: #{weighted_loss.1} parent=0 // pred_region
    %92 = vst [vmem:[%s3] sm:$0xff] 0.0
    %93 = vst [vmem:[%s4] sm:$0xff] 0.0
  $region17: #{weighted_loss.1} parent=0 // pred_fallthru
    _
  %v94 = vld [vmem:[%s66] sm:$0x1]
  %v95 = vld [vmem:[%s75] sm:$0x1]
  %v96 = vld [vmem:[%s84] sm:$0x1]
  %v97 = vmax.f32 %v94, 0.0
  %v98 = vmul.f32 %v94, %v95
  %v99 = vsub.f32 %v97, %v98
  %v100 = vand.u32 2147483647, %v94
  %v101 = vsub.f32 0.0, %v100
  %v102 = vmul.f32 %v101, 1.442695
  %v103 = vpow.pop %v102
  %v104 = vadd.f32 %v103, 1.0
  %v105 = vlog2.pop %v104
  %v106 = vmul.f32 %v105, 0.6931472
  %v107 = vmul.f32 -0.5, %v103
  %v108 = vadd.f32 %v107, 1.0
  %v109 = vmul.f32 %v108, %v103
  %v110 = vand.u32 2147483647, %v103
  %vm111 = vcmp.lt.f32.partialorder %v110, 0.0004427343
  %v112 = vsel %vm111, %v109, %v106
  %v113 = vadd.f32 %v99, %v112
  %v114 = vmul.f32 %v113, %v96
  %v115 = vld [vmem:[%s3] sm:$0x1]
  %v116 = vadd.f32 %v114, 0.0
  %v117 = vadd.f32 %v115, %v116
  %118 = vst [vmem:[%s3] sm:$0x1] %v117
  %v119 = vld [vmem:[%s4] sm:$0x1]
  %v120 = vadd.f32 %v96, 0.0
  %v121 = vadd.f32 %v119, %v120
  %122 = vst [vmem:[%s4] sm:$0x1] %v121
  // Predicated region
  $region18: #{weighted_loss.1} parent=0 // pred_check
    _
  $region19: #{weighted_loss.1} parent=0 // pred_check_branch
    %124 = sbr.rel (0) target = $region21
  $region20: #{weighted_loss.1} parent=0 // pred_region
    _
  $region21: #{weighted_loss.1} parent=0 // pred_fallthru
    _
  // Predicated region
  $region22: #{weighted_loss.1} parent=0 // pred_check
    _
  $region23: #{weighted_loss.1} parent=0 // pred_check_branch
    %126 = sbr.rel (0) target = $region25
  $region24: #{weighted_loss.1} parent=0 // pred_region
    _
  $region25: #{weighted_loss.1} parent=0 // pred_fallthru
    _
  // Predicated region
  $region26: #{weighted_loss.1} parent=0 // pred_check
    _
  $region27: #{weighted_loss.1} parent=0 // pred_check_branch
    %128 = sbr.rel (0) target = $region29
  $region28: #{weighted_loss.1} parent=0 // pred_region
    _
  $region29: #{weighted_loss.1} parent=0 // pred_fallthru
    _
  // Predicated region
  $region30: #{weighted_loss.1} parent=0 // pred_check
    _
  $region31: #{weighted_loss.1} parent=0 // pred_check_branch
    %130 = sbr.rel (0) target = $region33
  $region32: #{weighted_loss.1} parent=0 // pred_region
    _
  $region33: #{weighted_loss.1} parent=0 // pred_fallthru
    _

</llo_original>
